<compile_context>
chip_gen: v6e
topology: v6e:2x2x1
jax: 0.10.0
libtpu: 0.0.40
codegen_flags: <defaults>
</compile_context>

<pallas_src>
import functools

import jax
import jax.numpy as jnp
from jax.experimental import pallas as pl
from jax.experimental.pallas import tpu as pltpu


def _round_up(x, m):
    return ((x + m - 1) // m) * m


def _cdiv(a, b):
    return -(-a // b)


def branchnet_kernel(x_ref,
                     w1_ref, b1_ref,
                     w2_ref, b2_ref,
                     w3_ref, b3_ref,
                     w4_ref, b4_ref,
                     w5_ref, b5_ref,
                     out_ref, *, mxu_dtype):
    """Fused 5-layer MLP on one transposed batch tile.

    x_ref:   (in_dim, tile_b)  mxu_dtype   (batch in the lane dimension)
    w*_ref:  (fan_out, fan_in) mxu_dtype   (native PyTorch layout)
    b*_ref:  (fan_out, 1)      f32
    out_ref: (out_dim, tile_b) f32
    """
    h = x_ref[...]                                   # (in_dim, tile_b)

    def hidden(h, w_ref, b_ref):
        # MXU matmul, f32 accumulation; bias add + tanh in f32 (accuracy, and
        # works on v5e which lacks bf16 VPU/EUP); cast back to the MXU input
        # dtype only for the next matmul.
        y = jnp.dot(w_ref[...], h, preferred_element_type=jnp.float32)
        y = y + b_ref[...]                           # lane-broadcast bias
        return jnp.tanh(y).astype(mxu_dtype)

    h = hidden(h, w1_ref, b1_ref)
    h = hidden(h, w2_ref, b2_ref)
    h = hidden(h, w3_ref, b3_ref)
    h = hidden(h, w4_ref, b4_ref)

    # Final linear, no activation.  Lane-dense (out_dim, tile_b) store.
    y = jnp.dot(w5_ref[...], h, preferred_element_type=jnp.float32) + b5_ref[...]
    out_ref[...] = y.astype(out_ref.dtype)


def branchnet_forward(x, params, *, tile_b=4096, mxu_dtype=jnp.bfloat16):
    """BranchNet forward.

    x:      (batch, in_dim) f32
    params: list of (W, b) with PyTorch layout W (fan_out, fan_in), b (fan_out,)
    Returns (batch, out_dim) f32, equal to the PyTorch module's forward.
    """
    batch, in_dim = x.shape
    out_dim = params[-1][0].shape[0]

    # ---- batch tile selection -----------------------------------------------
    # Batch is the lane dimension -> tiles are multiples of 128.  Large tiles
    # amortize per-step overhead; cap so batches > 128 give >= 2 grid steps
    # (v7x dual-TC sharding via "parallel").
    tile_b = max(128, _round_up(int(tile_b), 128))
    num_steps = _cdiv(batch, tile_b)
    if batch > 128:
        num_steps = max(num_steps, 2)
    tile_b = min(tile_b, max(128, _round_up(_cdiv(batch, num_steps), 128)))
    padded_batch = _round_up(batch, tile_b)

    # ---- transpose so batch sits in the lane axis; zero-pad the tail --------
    x_t = x.T                                        # (in_dim, batch)
    if padded_batch != batch:
        x_t = jnp.pad(x_t, ((0, 0), (0, padded_batch - batch)))
    x_t = x_t.astype(mxu_dtype)

    flat_args = [x_t]
    in_specs = [pl.BlockSpec((in_dim, tile_b), lambda i: (0, i))]
    for w, b in params:
        w = w.astype(mxu_dtype)                      # MXU input dtype
        b = jnp.reshape(b, (-1, 1)).astype(jnp.float32)  # added to f32 accum
        flat_args.extend([w, b])
        # Constant index_map: weights/biases stay VMEM-resident across steps.
        in_specs.append(pl.BlockSpec(w.shape, lambda i: (0, 0)))
        in_specs.append(pl.BlockSpec(b.shape, lambda i: (0, 0)))

    kernel = functools.partial(branchnet_kernel, mxu_dtype=mxu_dtype)

    y_t = pl.pallas_call(
        kernel,
        out_shape=jax.ShapeDtypeStruct((out_dim, padded_batch), jnp.float32),
        grid=(padded_batch // tile_b,),
        in_specs=in_specs,
        out_specs=pl.BlockSpec((out_dim, tile_b), lambda i: (0, i)),
        compiler_params=pltpu.CompilerParams(
            dimension_semantics=("parallel",)),      # dual-TC split on v7x
    )(*flat_args)

    return y_t[:, :batch].T                          # (batch, out_dim) f32


def init_branchnet_params(key, in_dim, out_dim, width=32):
    """PyTorch-style default init; W stored (fan_out, fan_in), b (fan_out,)."""
    dims = [(width, in_dim), (width, width), (width, width), (width, width),
            (out_dim, width)]
    params = []
    for fan_out, fan_in in dims:
        key, kw, kb = jax.random.split(key, 3)
        bound = 1.0 / (fan_in ** 0.5)
        w = jax.random.uniform(kw, (fan_out, fan_in), jnp.float32, -bound, bound)
        b = jax.random.uniform(kb, (fan_out,), jnp.float32, -bound, bound)
        params.append((w, b))
    return params


def branchnet_reference(x, params):
    """Pure-JAX f32 reference (mirrors the PyTorch module exactly)."""
    h = x
    for i, (w, b) in enumerate(params):
        h = h @ w.T + b
        if i < len(params) - 1:
            h = jnp.tanh(h)
    return h


if __name__ == "__main__":
    key = jax.random.PRNGKey(0)
    in_dim, out_dim, width = 16, 8, 32

    kx1, kx2, kp = jax.random.split(key, 3)
    params = init_branchnet_params(kp, in_dim, out_dim, width)

    # bf16 path quantizes only MXU inputs; bias/tanh stay f32 -> tight-ish tol.
    bf16_tol = 2.5e-2

    # Case 1: tiny batch (single grid step; matches the toy PyTorch usage).
    x_small = jax.random.normal(kx1, (8, in_dim), dtype=jnp.float32)
    y_small = jax.block_until_ready(branchnet_forward(x_small, params))
    ref_small = branchnet_reference(x_small, params)
    assert y_small.shape == (8, out_dim)
    assert jnp.allclose(y_small, ref_small, atol=bf16_tol, rtol=bf16_tol), \
        "small-batch mismatch vs reference"

    # Case 2: multi-step grid with a ragged tail (300 rows, tile_b=128 -> 3 steps).
    x_big = jax.random.normal(kx2, (300, in_dim), dtype=jnp.float32)
    y_big = jax.block_until_ready(branchnet_forward(x_big, params, tile_b=128))
    ref_big = branchnet_reference(x_big, params)
    assert y_big.shape == (300, out_dim)
    assert jnp.allclose(y_big, ref_big, atol=bf16_tol, rtol=bf16_tol), \
        "multi-tile mismatch vs reference"

    # Case 3: f32 MXU-input path matches the reference tightly.
    y_f32 = jax.block_until_ready(
        branchnet_forward(x_big, params, tile_b=128, mxu_dtype=jnp.float32))
    assert jnp.allclose(y_f32, ref_big, atol=1e-5, rtol=1e-5), \
        "f32 path mismatch vs reference"

    print("KERNEL_OK")
</pallas_src>

<mosaic_0001>
module attributes {stable_mosaic.version = 11 : i64} {
  func.func @branchnet_kernel(%arg0: i32, %arg1: memref<16x128xbf16, #tpu.memory_space<vmem>>, %arg2: memref<32x16xbf16, #tpu.memory_space<vmem>>, %arg3: memref<32x1xf32, #tpu.memory_space<vmem>>, %arg4: memref<32x32xbf16, #tpu.memory_space<vmem>>, %arg5: memref<32x1xf32, #tpu.memory_space<vmem>>, %arg6: memref<32x32xbf16, #tpu.memory_space<vmem>>, %arg7: memref<32x1xf32, #tpu.memory_space<vmem>>, %arg8: memref<32x32xbf16, #tpu.memory_space<vmem>>, %arg9: memref<32x1xf32, #tpu.memory_space<vmem>>, %arg10: memref<8x32xbf16, #tpu.memory_space<vmem>>, %arg11: memref<8x1xf32, #tpu.memory_space<vmem>>, %arg12: memref<8x128xf32, #tpu.memory_space<vmem>>) attributes {dimension_semantics = [#tpu.dimension_semantics<parallel>], iteration_bounds = array<i64: 1>, scalar_prefetch = 0 : i64, scratch_operands = 0 : i64, tpu.core_type = #tpu.core_type<tc>, window_params = [{transform_indices = @transform_0, window_bounds = array<i64: 16, 128>}, {pipeline_mode = #tpu.pipeline_mode<synchronous>, transform_indices = @transform_1, window_bounds = array<i64: 32, 16>}, {pipeline_mode = #tpu.pipeline_mode<synchronous>, transform_indices = @transform_2, window_bounds = array<i64: 32, 1>}, {pipeline_mode = #tpu.pipeline_mode<synchronous>, transform_indices = @transform_3, window_bounds = array<i64: 32, 32>}, {pipeline_mode = #tpu.pipeline_mode<synchronous>, transform_indices = @transform_4, window_bounds = array<i64: 32, 1>}, {pipeline_mode = #tpu.pipeline_mode<synchronous>, transform_indices = @transform_5, window_bounds = array<i64: 32, 32>}, {pipeline_mode = #tpu.pipeline_mode<synchronous>, transform_indices = @transform_6, window_bounds = array<i64: 32, 1>}, {pipeline_mode = #tpu.pipeline_mode<synchronous>, transform_indices = @transform_7, window_bounds = array<i64: 32, 32>}, {pipeline_mode = #tpu.pipeline_mode<synchronous>, transform_indices = @transform_8, window_bounds = array<i64: 32, 1>}, {pipeline_mode = #tpu.pipeline_mode<synchronous>, transform_indices = @transform_9, window_bounds = array<i64: 8, 32>}, {pipeline_mode = #tpu.pipeline_mode<synchronous>, transform_indices = @transform_10, window_bounds = array<i64: 8, 1>}, {transform_indices = @transform_11, window_bounds = array<i64: 8, 128>}]} {
    %c0 = arith.constant 0 : index
    %c0_0 = arith.constant 0 : index
    %0 = vector.load %arg1[%c0, %c0_0] : memref<16x128xbf16, #tpu.memory_space<vmem>>, vector<16x128xbf16>
    %c0_1 = arith.constant 0 : index
    %c0_2 = arith.constant 0 : index
    %1 = vector.load %arg2[%c0_1, %c0_2] : memref<32x16xbf16, #tpu.memory_space<vmem>>, vector<32x16xbf16>
    %cst = arith.constant dense<0.000000e+00> : vector<32x128xf32>
    %2 = tpu.matmul %1, %0, %cst {dimension_numbers = #tpu.dot_dimension_numbers<[1], [0], [0], [1], [0, 0, 1, 1], [], []>} : vector<32x16xbf16>, vector<16x128xbf16>, vector<32x128xf32> -> vector<32x128xf32>
    %c0_3 = arith.constant 0 : index
    %c0_4 = arith.constant 0 : index
    %3 = vector.load %arg3[%c0_3, %c0_4] : memref<32x1xf32, #tpu.memory_space<vmem>>, vector<32x1xf32>
    %4 = vector.broadcast %3 : vector<32x1xf32> to vector<32x128xf32>
    %5 = arith.addf %2, %4 : vector<32x128xf32>
    %6 = math.tanh %5 : vector<32x128xf32>
    %7 = arith.truncf %6 : vector<32x128xf32> to vector<32x128xbf16>
    %c0_5 = arith.constant 0 : index
    %c0_6 = arith.constant 0 : index
    %8 = vector.load %arg4[%c0_5, %c0_6] : memref<32x32xbf16, #tpu.memory_space<vmem>>, vector<32x32xbf16>
    %cst_7 = arith.constant dense<0.000000e+00> : vector<32x128xf32>
    %9 = tpu.matmul %8, %7, %cst_7 {dimension_numbers = #tpu.dot_dimension_numbers<[1], [0], [0], [1], [0, 0, 1, 1], [], []>} : vector<32x32xbf16>, vector<32x128xbf16>, vector<32x128xf32> -> vector<32x128xf32>
    %c0_8 = arith.constant 0 : index
    %c0_9 = arith.constant 0 : index
    %10 = vector.load %arg5[%c0_8, %c0_9] : memref<32x1xf32, #tpu.memory_space<vmem>>, vector<32x1xf32>
    %11 = vector.broadcast %10 : vector<32x1xf32> to vector<32x128xf32>
    %12 = arith.addf %9, %11 : vector<32x128xf32>
    %13 = math.tanh %12 : vector<32x128xf32>
    %14 = arith.truncf %13 : vector<32x128xf32> to vector<32x128xbf16>
    %c0_10 = arith.constant 0 : index
    %c0_11 = arith.constant 0 : index
    %15 = vector.load %arg6[%c0_10, %c0_11] : memref<32x32xbf16, #tpu.memory_space<vmem>>, vector<32x32xbf16>
    %cst_12 = arith.constant dense<0.000000e+00> : vector<32x128xf32>
    %16 = tpu.matmul %15, %14, %cst_12 {dimension_numbers = #tpu.dot_dimension_numbers<[1], [0], [0], [1], [0, 0, 1, 1], [], []>} : vector<32x32xbf16>, vector<32x128xbf16>, vector<32x128xf32> -> vector<32x128xf32>
    %c0_13 = arith.constant 0 : index
    %c0_14 = arith.constant 0 : index
    %17 = vector.load %arg7[%c0_13, %c0_14] : memref<32x1xf32, #tpu.memory_space<vmem>>, vector<32x1xf32>
    %18 = vector.broadcast %17 : vector<32x1xf32> to vector<32x128xf32>
    %19 = arith.addf %16, %18 : vector<32x128xf32>
    %20 = math.tanh %19 : vector<32x128xf32>
    %21 = arith.truncf %20 : vector<32x128xf32> to vector<32x128xbf16>
    %c0_15 = arith.constant 0 : index
    %c0_16 = arith.constant 0 : index
    %22 = vector.load %arg8[%c0_15, %c0_16] : memref<32x32xbf16, #tpu.memory_space<vmem>>, vector<32x32xbf16>
    %cst_17 = arith.constant dense<0.000000e+00> : vector<32x128xf32>
    %23 = tpu.matmul %22, %21, %cst_17 {dimension_numbers = #tpu.dot_dimension_numbers<[1], [0], [0], [1], [0, 0, 1, 1], [], []>} : vector<32x32xbf16>, vector<32x128xbf16>, vector<32x128xf32> -> vector<32x128xf32>
    %c0_18 = arith.constant 0 : index
    %c0_19 = arith.constant 0 : index
    %24 = vector.load %arg9[%c0_18, %c0_19] : memref<32x1xf32, #tpu.memory_space<vmem>>, vector<32x1xf32>
    %25 = vector.broadcast %24 : vector<32x1xf32> to vector<32x128xf32>
    %26 = arith.addf %23, %25 : vector<32x128xf32>
    %27 = math.tanh %26 : vector<32x128xf32>
    %28 = arith.truncf %27 : vector<32x128xf32> to vector<32x128xbf16>
    %c0_20 = arith.constant 0 : index
    %c0_21 = arith.constant 0 : index
    %29 = vector.load %arg10[%c0_20, %c0_21] : memref<8x32xbf16, #tpu.memory_space<vmem>>, vector<8x32xbf16>
    %cst_22 = arith.constant dense<0.000000e+00> : vector<8x128xf32>
    %30 = tpu.matmul %29, %28, %cst_22 {dimension_numbers = #tpu.dot_dimension_numbers<[1], [0], [0], [1], [0, 0, 1, 1], [], []>} : vector<8x32xbf16>, vector<32x128xbf16>, vector<8x128xf32> -> vector<8x128xf32>
    %c0_23 = arith.constant 0 : index
    %c0_24 = arith.constant 0 : index
    %31 = vector.load %arg11[%c0_23, %c0_24] : memref<8x1xf32, #tpu.memory_space<vmem>>, vector<8x1xf32>
    %32 = vector.broadcast %31 : vector<8x1xf32> to vector<8x128xf32>
    %33 = arith.addf %30, %32 : vector<8x128xf32>
    %c0_25 = arith.constant 0 : index
    %c0_26 = arith.constant 0 : index
    %34 = vector.load %arg12[%c0_25, %c0_26] : memref<8x128xf32, #tpu.memory_space<vmem>>, vector<8x128xf32>
    tpu.vector_store %arg12[%c0_25, %c0_26], %33 {strides = array<i32>} : memref<8x128xf32, #tpu.memory_space<vmem>>, vector<8x128xf32>,
    return
  }
  func.func @transform_0(%arg0: i32) -> (i32, i32) {
    %c0_i32 = arith.constant 0 : i32
    %c0_i32_0 = arith.constant 0 : i32
    return %c0_i32, %arg0 : i32, i32
  }
  func.func @transform_1(%arg0: i32) -> (i32, i32) {
    %c0_i32 = arith.constant 0 : i32
    %c0_i32_0 = arith.constant 0 : i32
    %c0_i32_1 = arith.constant 0 : i32
    return %c0_i32, %c0_i32_0 : i32, i32
  }
  func.func @transform_2(%arg0: i32) -> (i32, i32) {
    %c0_i32 = arith.constant 0 : i32
    %c0_i32_0 = arith.constant 0 : i32
    %c0_i32_1 = arith.constant 0 : i32
    return %c0_i32, %c0_i32_0 : i32, i32
  }
  func.func @transform_3(%arg0: i32) -> (i32, i32) {
    %c0_i32 = arith.constant 0 : i32
    %c0_i32_0 = arith.constant 0 : i32
    %c0_i32_1 = arith.constant 0 : i32
    return %c0_i32, %c0_i32_0 : i32, i32
  }
  func.func @transform_4(%arg0: i32) -> (i32, i32) {
    %c0_i32 = arith.constant 0 : i32
    %c0_i32_0 = arith.constant 0 : i32
    %c0_i32_1 = arith.constant 0 : i32
    return %c0_i32, %c0_i32_0 : i32, i32
  }
  func.func @transform_5(%arg0: i32) -> (i32, i32) {
    %c0_i32 = arith.constant 0 : i32
    %c0_i32_0 = arith.constant 0 : i32
    %c0_i32_1 = arith.constant 0 : i32
    return %c0_i32, %c0_i32_0 : i32, i32
  }
  func.func @transform_6(%arg0: i32) -> (i32, i32) {
    %c0_i32 = arith.constant 0 : i32
    %c0_i32_0 = arith.constant 0 : i32
    %c0_i32_1 = arith.constant 0 : i32
    return %c0_i32, %c0_i32_0 : i32, i32
  }
  func.func @transform_7(%arg0: i32) -> (i32, i32) {
    %c0_i32 = arith.constant 0 : i32
    %c0_i32_0 = arith.constant 0 : i32
    %c0_i32_1 = arith.constant 0 : i32
    return %c0_i32, %c0_i32_0 : i32, i32
  }
  func.func @transform_8(%arg0: i32) -> (i32, i32) {
    %c0_i32 = arith.constant 0 : i32
    %c0_i32_0 = arith.constant 0 : i32
    %c0_i32_1 = arith.constant 0 : i32
    return %c0_i32, %c0_i32_0 : i32, i32
  }
  func.func @transform_9(%arg0: i32) -> (i32, i32) {
    %c0_i32 = arith.constant 0 : i32
    %c0_i32_0 = arith.constant 0 : i32
    %c0_i32_1 = arith.constant 0 : i32
    return %c0_i32, %c0_i32_0 : i32, i32
  }
  func.func @transform_10(%arg0: i32) -> (i32, i32) {
    %c0_i32 = arith.constant 0 : i32
    %c0_i32_0 = arith.constant 0 : i32
    %c0_i32_1 = arith.constant 0 : i32
    return %c0_i32, %c0_i32_0 : i32, i32
  }
  func.func @transform_11(%arg0: i32) -> (i32, i32) {
    %c0_i32 = arith.constant 0 : i32
    %c0_i32_0 = arith.constant 0 : i32
    return %c0_i32, %arg0 : i32, i32
  }
}

</mosaic_0001>

<llo_original>
// kernel: tpu_custom_call.1
$region0: #{tpu_custom_call.1}
  #allocation0 [shape = 'u32[]', space=smem, size = 0x4, offset = 0x4, fixed_abs, tag = 'smem constant byte address 0x4 - core index']
  #allocation1 [shape = 'u32[144,128]{1,0:T(1,128)}', space=vmem, size = 0x12000, scoped, tag = 'internal scratch']
  %s0 = inlined_call_operand.vmem [shape: bf16[16,128], index: 0, kind: input, shape index: {}]
  %s1 = inlined_call_operand.vmem [shape: bf16[32,16], index: 1, kind: input, shape index: {}]
  %s2 = inlined_call_operand.vmem [shape: f32[32,1], index: 2, kind: input, shape index: {}]
  %s3 = inlined_call_operand.vmem [shape: bf16[32,32], index: 3, kind: input, shape index: {}]
  %s4 = inlined_call_operand.vmem [shape: f32[32,1], index: 4, kind: input, shape index: {}]
  %s5 = inlined_call_operand.vmem [shape: bf16[32,32], index: 5, kind: input, shape index: {}]
  %s6 = inlined_call_operand.vmem [shape: f32[32,1], index: 6, kind: input, shape index: {}]
  %s7 = inlined_call_operand.vmem [shape: bf16[32,32], index: 7, kind: input, shape index: {}]
  %s8 = inlined_call_operand.vmem [shape: f32[32,1], index: 8, kind: input, shape index: {}]
  %s9 = inlined_call_operand.vmem [shape: bf16[8,32], index: 9, kind: input, shape index: {}]
  %s10 = inlined_call_operand.vmem [shape: f32[8,1], index: 10, kind: input, shape index: {}]
  %s11 = inlined_call_operand.hbm [shape: f32[8,128], index: 11, kind: output, shape index: {}]
  %s12 = sld [smem:[#allocation0]]
  $region54: #{tpu_custom_call.1} parent=0
    _
  %s14 = ssub.s32 1, %s12
  %s15 = scalar_select 0, %s14, %s12
  $region1: #{tpu_custom_call.1} parent=0
    #allocation2 [shape = 'u8[4096]{0}', space=vmem, size = 0x1000, scoped, tag = 'output window, operand 0, single buffered']
    #allocation3 [shape = 's32[1]{0}', space=sflag, size = 0x4, scoped, tag = 'scoped memory for tpu_custom_call.1']
    %16 = vsyncpa [#allocation3], 0
    // Predicated region
    $region2: #{tpu_custom_call.1} parent=1 // pred_check
      _
    $region3: #{tpu_custom_call.1} parent=1 // pred_check_branch
      %18 = sbr.rel (0) target = $region5
    $region4: #{tpu_custom_call.1} parent=1 // pred_region
      _
    $region5: #{tpu_custom_call.1} parent=1 // pred_fallthru
      _
    // Predicated region
    $region6: #{tpu_custom_call.1} parent=1 // pred_check
      _
    $region7: #{tpu_custom_call.1} parent=1 // pred_check_branch
      %20 = sbr.rel (0) target = $region9
    $region8: #{tpu_custom_call.1} parent=1 // pred_region
      _
    $region9: #{tpu_custom_call.1} parent=1 // pred_fallthru
      _
    // Predicated region
    $region10: #{tpu_custom_call.1} parent=1 // pred_check
      _
    $region11: #{tpu_custom_call.1} parent=1 // pred_check_branch
      %22 = sbr.rel (0) target = $region13
    $region12: #{tpu_custom_call.1} parent=1 // pred_region
      _
    $region13: #{tpu_custom_call.1} parent=1 // pred_fallthru
      _
    // Predicated region
    $region14: #{tpu_custom_call.1} parent=1 // pred_check
      _
    $region15: #{tpu_custom_call.1} parent=1 // pred_check_branch
      %24 = sbr.rel (0) target = $region17
    $region16: #{tpu_custom_call.1} parent=1 // pred_region
      _
    $region17: #{tpu_custom_call.1} parent=1 // pred_fallthru
      _
    // Predicated region
    $region18: #{tpu_custom_call.1} parent=1 // pred_check
      _
    $region19: #{tpu_custom_call.1} parent=1 // pred_check_branch
      %26 = sbr.rel (0) target = $region21
    $region20: #{tpu_custom_call.1} parent=1 // pred_region
      _
    $region21: #{tpu_custom_call.1} parent=1 // pred_fallthru
      _
    // Predicated region
    $region22: #{tpu_custom_call.1} parent=1 // pred_check
      _
    $region23: #{tpu_custom_call.1} parent=1 // pred_check_branch
      %28 = sbr.rel (0) target = $region25
    $region24: #{tpu_custom_call.1} parent=1 // pred_region
      _
    $region25: #{tpu_custom_call.1} parent=1 // pred_fallthru
      _
    // Predicated region
    $region26: #{tpu_custom_call.1} parent=1 // pred_check
      _
    $region27: #{tpu_custom_call.1} parent=1 // pred_check_branch
      %30 = sbr.rel (0) target = $region29
    $region28: #{tpu_custom_call.1} parent=1 // pred_region
      _
    $region29: #{tpu_custom_call.1} parent=1 // pred_fallthru
      _
    // Predicated region
    $region30: #{tpu_custom_call.1} parent=1 // pred_check
      _
    $region31: #{tpu_custom_call.1} parent=1 // pred_check_branch
      %32 = sbr.rel (0) target = $region33
    $region32: #{tpu_custom_call.1} parent=1 // pred_region
      _
    $region33: #{tpu_custom_call.1} parent=1 // pred_fallthru
      _
    // Predicated region
    $region34: #{tpu_custom_call.1} parent=1 // pred_check
      _
    $region35: #{tpu_custom_call.1} parent=1 // pred_check_branch
      %34 = sbr.rel (0) target = $region37
    $region36: #{tpu_custom_call.1} parent=1 // pred_region
      _
    $region37: #{tpu_custom_call.1} parent=1 // pred_fallthru
      _
    // Predicated region
    $region38: #{tpu_custom_call.1} parent=1 // pred_check
      _
    $region39: #{tpu_custom_call.1} parent=1 // pred_check_branch
      %36 = sbr.rel (0) target = $region41
    $region40: #{tpu_custom_call.1} parent=1 // pred_region
      _
    $region41: #{tpu_custom_call.1} parent=1 // pred_fallthru
      _
    // Predicated region
    $region42: #{tpu_custom_call.1} parent=1 // pred_check
      _
    $region43: #{tpu_custom_call.1} parent=1 // pred_check_branch
      %38 = sbr.rel (0) target = $region45
    $region44: #{tpu_custom_call.1} parent=1 // pred_region
      _
    $region45: #{tpu_custom_call.1} parent=1 // pred_fallthru
      _
    %v40 = vld [vmem:[%s0] sm:$0xf]
    %v41 = vld [vmem:[%s0 + $0x4] sm:$0xf]
    %v42 = vld [vmem:[%s1] sm:$0xf]
    %v43 = vld [vmem:[%s1 + $0x4] sm:$0xf]
    %v44 = vld [vmem:[%s1 + $0x8] sm:$0xf]
    %v45 = vld [vmem:[%s1 + $0xc] sm:$0xf]
    %v46 = vld [vmem:[%s2] sm:$0xff]
    %v47 = vld [vmem:[%s2 + $0x8] sm:$0xff]
    %v48 = vld [vmem:[%s2 + $0x10] sm:$0xff]
    %v49 = vld [vmem:[%s2 + $0x18] sm:$0xff]
    %51 = vset.pattern.permute.xlu0 0
    %52 = vperm.xlu0 %51, %v46
    %v53 = vpop.permute.xlu0 %52
    %56 = vset.pattern.permute.xlu0 0
    %57 = vperm.xlu0 %56, %v47
    %v58 = vpop.permute.xlu0 %57
    %61 = vset.pattern.permute.xlu0 0
    %62 = vperm.xlu0 %61, %v48
    %v63 = vpop.permute.xlu0 %62
    %66 = vset.pattern.permute.xlu0 0
    %67 = vperm.xlu0 %66, %v49
    %v68 = vpop.permute.xlu0 %67
    %v74 = vunpack.c.l.b16 %v42
    %v75 = vunpack.c.l.b16 %v43
    %v76 = vunpack.c.l.b16 %v44
    %v77 = vunpack.c.l.b16 %v45
    %v78 = vpack.c.b16 %v75, %v74
    %v79 = vpack.c.b16 %v77, %v76
    %v82 = vunpack.c.l.b16 %v40
    %v83 = vunpack.c.l.b16 %v41
    %v84 = vpack.c.b16 %v83, %v82
    %vm86 = vcmask 130048
    %v88 = vsel %vm86, %v78, 0
    %v91 = vsel %vm86, %v79, 0
    %93 = vmatprep.subr.bf16.mxu0 0
    %94 = vmatpush1.bf16.msra.mxu0 0
    %95 = vmatprep.subr.bf16.mxu0 0
    %96 = vmatpush1.bf16.msra.mxu0 0
    %97 = vmatprep.subr.bf16.mxu0 0
    %98 = vmatpush1.bf16.msra.mxu0 0
    %99 = vmatprep.subr.bf16.mxu0 0
    %100 = vmatpush1.bf16.msra.mxu0 0
    %101 = vmatprep.subr.bf16.mxu0 0
    %102 = vmatpush1.bf16.msra.mxu0 0
    %103 = vmatprep.subr.bf16.mxu0 0
    %104 = vmatpush1.bf16.msra.mxu0 0
    %105 = vmatprep.subr.bf16.mxu0 0
    %106 = vmatpush1.bf16.msra.mxu0 0
    %107 = vmatprep.subr.bf16.mxu0 0
    %108 = vmatpush1.bf16.msra.mxu0 %v84
    %109 = vmatprep.subr.bf16.mxu0 0
    %110 = vmatpush2.bf16.msra.mxu0 0
    %111 = vmatprep.subr.bf16.mxu0 0
    %112 = vmatpush2.bf16.msra.mxu0 0
    %113 = vmatprep.subr.bf16.mxu0 0
    %114 = vmatpush2.bf16.msra.mxu0 0
    %115 = vmatprep.subr.bf16.mxu0 0
    %116 = vmatpush2.bf16.msra.mxu0 0
    %117 = vmatprep.subr.bf16.mxu0 0
    %118 = vmatpush2.bf16.msra.mxu0 0
    %119 = vmatprep.subr.bf16.mxu0 0
    %120 = vmatpush2.bf16.msra.mxu0 0
    %121 = vmatprep.subr.bf16.mxu0 0
    %122 = vmatpush2.bf16.msra.mxu0 0
    %123 = vmatprep.subr.bf16.mxu0 0
    %124 = vmatpush2.bf16.msra.mxu0 0
    %125 = vmatprep.mubr.bf16.mxu0 0
    %126 = vmatmul.mubr.bf16.gmra.mxu0 %v88
    %v127 = vpop.f32.mrf.mxu0
    %v128 = vadd.f32 %v53, %v127
    %v129 = vpop.f32.mrf.mxu0
    %v130 = vpop.f32.mrf.mxu0
    %v131 = vadd.f32 %v58, %v130
    %v132 = vpop.f32.mrf.mxu0
    %133 = vmatprep.mubr.bf16.mxu0 0
    %134 = vmatmul.mubr.bf16.gmra.mxu0 %v91
    %v135 = vpop.f32.mrf.mxu0
    %v136 = vadd.f32 %v63, %v135
    %v137 = vpop.f32.mrf.mxu0
    %v138 = vpop.f32.mrf.mxu0
    %v139 = vadd.f32 %v68, %v138
    %v140 = vpop.f32.mrf.mxu0
    %141 = vdwg.mxu0
    %v142 = vtanh.pop %v128
    %v143 = vtanh.pop %v131
    %v144 = vtanh.pop %v136
    %v145 = vtanh.pop %v139
    %v146 = vpack.c.bf16 %v143, %v142
    %v147 = vpack.c.bf16 %v145, %v144
    %v148 = vld [vmem:[%s3] sm:$0xf]
    %v149 = vld [vmem:[%s3 + $0x4] sm:$0xf]
    %v150 = vld [vmem:[%s3 + $0x8] sm:$0xf]
    %v151 = vld [vmem:[%s3 + $0xc] sm:$0xf]
    %v152 = vld [vmem:[%s4] sm:$0xff]
    %v153 = vld [vmem:[%s4 + $0x8] sm:$0xff]
    %v154 = vld [vmem:[%s4 + $0x10] sm:$0xff]
    %v155 = vld [vmem:[%s4 + $0x18] sm:$0xff]
    %157 = vset.pattern.permute.xlu0 0
    %158 = vperm.xlu0 %157, %v152
    %v159 = vpop.permute.xlu0 %158
    %162 = vset.pattern.permute.xlu0 0
    %163 = vperm.xlu0 %162, %v153
    %v164 = vpop.permute.xlu0 %163
    %167 = vset.pattern.permute.xlu0 0
    %168 = vperm.xlu0 %167, %v154
    %v169 = vpop.permute.xlu0 %168
    %172 = vset.pattern.permute.xlu0 0
    %173 = vperm.xlu0 %172, %v155
    %v174 = vpop.permute.xlu0 %173
    %v180 = vunpack.c.l.b16 %v148
    %v181 = vunpack.c.l.b16 %v149
    %v182 = vunpack.c.l.b16 %v150
    %v183 = vunpack.c.l.b16 %v151
    %v184 = vpack.c.b16 %v181, %v180
    %v185 = vpack.c.b16 %v183, %v182
    %vm186 = vcmask 261120
    %v188 = vsel %vm186, %v184, 0
    %v191 = vsel %vm186, %v185, 0
    %193 = vmatprep.subr.bf16.mxu0 0
    %194 = vmatpush1.bf16.msra.mxu0 0
    %195 = vmatprep.subr.bf16.mxu0 0
    %196 = vmatpush1.bf16.msra.mxu0 0
    %197 = vmatprep.subr.bf16.mxu0 0
    %198 = vmatpush1.bf16.msra.mxu0 0
    %199 = vmatprep.subr.bf16.mxu0 0
    %200 = vmatpush1.bf16.msra.mxu0 0
    %201 = vmatprep.subr.bf16.mxu0 0
    %202 = vmatpush1.bf16.msra.mxu0 0
    %203 = vmatprep.subr.bf16.mxu0 0
    %204 = vmatpush1.bf16.msra.mxu0 0
    %205 = vmatprep.subr.bf16.mxu0 0
    %206 = vmatpush1.bf16.msra.mxu0 %v147
    %207 = vmatprep.subr.bf16.mxu0 0
    %208 = vmatpush1.bf16.msra.mxu0 %v146
    %209 = vmatprep.subr.bf16.mxu0 0
    %210 = vmatpush2.bf16.msra.mxu0 0
    %211 = vmatprep.subr.bf16.mxu0 0
    %212 = vmatpush2.bf16.msra.mxu0 0
    %213 = vmatprep.subr.bf16.mxu0 0
    %214 = vmatpush2.bf16.msra.mxu0 0
    %215 = vmatprep.subr.bf16.mxu0 0
    %216 = vmatpush2.bf16.msra.mxu0 0
    %217 = vmatprep.subr.bf16.mxu0 0
    %218 = vmatpush2.bf16.msra.mxu0 0
    %219 = vmatprep.subr.bf16.mxu0 0
    %220 = vmatpush2.bf16.msra.mxu0 0
    %221 = vmatprep.subr.bf16.mxu0 0
    %222 = vmatpush2.bf16.msra.mxu0 0
    %223 = vmatprep.subr.bf16.mxu0 0
    %224 = vmatpush2.bf16.msra.mxu0 0
    %225 = vmatprep.mubr.bf16.mxu0 0
    %226 = vmatmul.mubr.bf16.gmra.mxu0 %v188
    %v227 = vpop.f32.mrf.mxu0
    %v228 = vadd.f32 %v159, %v227
    %v229 = vpop.f32.mrf.mxu0
    %v230 = vpop.f32.mrf.mxu0
    %v231 = vadd.f32 %v164, %v230
    %v232 = vpop.f32.mrf.mxu0
    %233 = vmatprep.mubr.bf16.mxu0 0
    %234 = vmatmul.mubr.bf16.gmra.mxu0 %v191
    %v235 = vpop.f32.mrf.mxu0
    %v236 = vadd.f32 %v169, %v235
    %v237 = vpop.f32.mrf.mxu0
    %v238 = vpop.f32.mrf.mxu0
    %v239 = vadd.f32 %v174, %v238
    %v240 = vpop.f32.mrf.mxu0
    %241 = vdwg.mxu0
    %v242 = vtanh.pop %v228
    %v243 = vtanh.pop %v231
    %v244 = vtanh.pop %v236
    %v245 = vtanh.pop %v239
    %v246 = vpack.c.bf16 %v243, %v242
    %v247 = vpack.c.bf16 %v245, %v244
    %v248 = vld [vmem:[%s5] sm:$0xf]
    %v249 = vld [vmem:[%s5 + $0x4] sm:$0xf]
    %v250 = vld [vmem:[%s5 + $0x8] sm:$0xf]
    %v251 = vld [vmem:[%s5 + $0xc] sm:$0xf]
    %v252 = vld [vmem:[%s6] sm:$0xff]
    %v253 = vld [vmem:[%s6 + $0x8] sm:$0xff]
    %v254 = vld [vmem:[%s6 + $0x10] sm:$0xff]
    %v255 = vld [vmem:[%s6 + $0x18] sm:$0xff]
    %257 = vset.pattern.permute.xlu0 0
    %258 = vperm.xlu0 %257, %v252
    %v259 = vpop.permute.xlu0 %258
    %262 = vset.pattern.permute.xlu0 0
    %263 = vperm.xlu0 %262, %v253
    %v264 = vpop.permute.xlu0 %263
    %267 = vset.pattern.permute.xlu0 0
    %268 = vperm.xlu0 %267, %v254
    %v269 = vpop.permute.xlu0 %268
    %272 = vset.pattern.permute.xlu0 0
    %273 = vperm.xlu0 %272, %v255
    %v274 = vpop.permute.xlu0 %273
    %v280 = vunpack.c.l.b16 %v248
    %v281 = vunpack.c.l.b16 %v249
    %v282 = vunpack.c.l.b16 %v250
    %v283 = vunpack.c.l.b16 %v251
    %v284 = vpack.c.b16 %v281, %v280
    %v285 = vpack.c.b16 %v283, %v282
    %v287 = vsel %vm186, %v284, 0
    %v290 = vsel %vm186, %v285, 0
    %292 = vmatprep.subr.bf16.mxu0 0
    %293 = vmatpush1.bf16.msra.mxu0 0
    %294 = vmatprep.subr.bf16.mxu0 0
    %295 = vmatpush1.bf16.msra.mxu0 0
    %296 = vmatprep.subr.bf16.mxu0 0
    %297 = vmatpush1.bf16.msra.mxu0 0
    %298 = vmatprep.subr.bf16.mxu0 0
    %299 = vmatpush1.bf16.msra.mxu0 0
    %300 = vmatprep.subr.bf16.mxu0 0
    %301 = vmatpush1.bf16.msra.mxu0 0
    %302 = vmatprep.subr.bf16.mxu0 0
    %303 = vmatpush1.bf16.msra.mxu0 0
    %304 = vmatprep.subr.bf16.mxu0 0
    %305 = vmatpush1.bf16.msra.mxu0 %v247
    %306 = vmatprep.subr.bf16.mxu0 0
    %307 = vmatpush1.bf16.msra.mxu0 %v246
    %308 = vmatprep.subr.bf16.mxu0 0
    %309 = vmatpush2.bf16.msra.mxu0 0
    %310 = vmatprep.subr.bf16.mxu0 0
    %311 = vmatpush2.bf16.msra.mxu0 0
    %312 = vmatprep.subr.bf16.mxu0 0
    %313 = vmatpush2.bf16.msra.mxu0 0
    %314 = vmatprep.subr.bf16.mxu0 0
    %315 = vmatpush2.bf16.msra.mxu0 0
    %316 = vmatprep.subr.bf16.mxu0 0
    %317 = vmatpush2.bf16.msra.mxu0 0
    %318 = vmatprep.subr.bf16.mxu0 0
    %319 = vmatpush2.bf16.msra.mxu0 0
    %320 = vmatprep.subr.bf16.mxu0 0
    %321 = vmatpush2.bf16.msra.mxu0 0
    %322 = vmatprep.subr.bf16.mxu0 0
    %323 = vmatpush2.bf16.msra.mxu0 0
    %324 = vmatprep.mubr.bf16.mxu0 0
    %325 = vmatmul.mubr.bf16.gmra.mxu0 %v287
    %v326 = vpop.f32.mrf.mxu0
    %v327 = vadd.f32 %v259, %v326
    %v328 = vpop.f32.mrf.mxu0
    %v329 = vpop.f32.mrf.mxu0
    %v330 = vadd.f32 %v264, %v329
    %v331 = vpop.f32.mrf.mxu0
    %332 = vmatprep.mubr.bf16.mxu0 0
    %333 = vmatmul.mubr.bf16.gmra.mxu0 %v290
    %v334 = vpop.f32.mrf.mxu0
    %v335 = vadd.f32 %v269, %v334
    %v336 = vpop.f32.mrf.mxu0
    %v337 = vpop.f32.mrf.mxu0
    %v338 = vadd.f32 %v274, %v337
    %v339 = vpop.f32.mrf.mxu0
    %340 = vdwg.mxu0
    %v341 = vtanh.pop %v327
    %v342 = vtanh.pop %v330
    %v343 = vtanh.pop %v335
    %v344 = vtanh.pop %v338
    %v345 = vpack.c.bf16 %v342, %v341
    %v346 = vpack.c.bf16 %v344, %v343
    %v347 = vld [vmem:[%s7] sm:$0xf]
    %v348 = vld [vmem:[%s7 + $0x4] sm:$0xf]
    %v349 = vld [vmem:[%s7 + $0x8] sm:$0xf]
    %v350 = vld [vmem:[%s7 + $0xc] sm:$0xf]
    %v351 = vld [vmem:[%s8] sm:$0xff]
    %v352 = vld [vmem:[%s8 + $0x8] sm:$0xff]
    %v353 = vld [vmem:[%s8 + $0x10] sm:$0xff]
    %v354 = vld [vmem:[%s8 + $0x18] sm:$0xff]
    %356 = vset.pattern.permute.xlu0 0
    %357 = vperm.xlu0 %356, %v351
    %v358 = vpop.permute.xlu0 %357
    %361 = vset.pattern.permute.xlu0 0
    %362 = vperm.xlu0 %361, %v352
    %v363 = vpop.permute.xlu0 %362
    %366 = vset.pattern.permute.xlu0 0
    %367 = vperm.xlu0 %366, %v353
    %v368 = vpop.permute.xlu0 %367
    %371 = vset.pattern.permute.xlu0 0
    %372 = vperm.xlu0 %371, %v354
    %v373 = vpop.permute.xlu0 %372
    %v379 = vunpack.c.l.b16 %v347
    %v380 = vunpack.c.l.b16 %v348
    %v381 = vunpack.c.l.b16 %v349
    %v382 = vunpack.c.l.b16 %v350
    %v383 = vpack.c.b16 %v380, %v379
    %v384 = vpack.c.b16 %v382, %v381
    %v386 = vsel %vm186, %v383, 0
    %v389 = vsel %vm186, %v384, 0
    %391 = vmatprep.subr.bf16.mxu0 0
    %392 = vmatpush1.bf16.msra.mxu0 0
    %393 = vmatprep.subr.bf16.mxu0 0
    %394 = vmatpush1.bf16.msra.mxu0 0
    %395 = vmatprep.subr.bf16.mxu0 0
    %396 = vmatpush1.bf16.msra.mxu0 0
    %397 = vmatprep.subr.bf16.mxu0 0
    %398 = vmatpush1.bf16.msra.mxu0 0
    %399 = vmatprep.subr.bf16.mxu0 0
    %400 = vmatpush1.bf16.msra.mxu0 0
    %401 = vmatprep.subr.bf16.mxu0 0
    %402 = vmatpush1.bf16.msra.mxu0 0
    %403 = vmatprep.subr.bf16.mxu0 0
    %404 = vmatpush1.bf16.msra.mxu0 %v346
    %405 = vmatprep.subr.bf16.mxu0 0
    %406 = vmatpush1.bf16.msra.mxu0 %v345
    %407 = vmatprep.subr.bf16.mxu0 0
    %408 = vmatpush2.bf16.msra.mxu0 0
    %409 = vmatprep.subr.bf16.mxu0 0
    %410 = vmatpush2.bf16.msra.mxu0 0
    %411 = vmatprep.subr.bf16.mxu0 0
    %412 = vmatpush2.bf16.msra.mxu0 0
    %413 = vmatprep.subr.bf16.mxu0 0
    %414 = vmatpush2.bf16.msra.mxu0 0
    %415 = vmatprep.subr.bf16.mxu0 0
    %416 = vmatpush2.bf16.msra.mxu0 0
    %417 = vmatprep.subr.bf16.mxu0 0
    %418 = vmatpush2.bf16.msra.mxu0 0
    %419 = vmatprep.subr.bf16.mxu0 0
    %420 = vmatpush2.bf16.msra.mxu0 0
    %421 = vmatprep.subr.bf16.mxu0 0
    %422 = vmatpush2.bf16.msra.mxu0 0
    %423 = vmatprep.mubr.bf16.mxu0 0
    %424 = vmatmul.mubr.bf16.gmra.mxu0 %v386
    %v425 = vpop.f32.mrf.mxu0
    %v426 = vadd.f32 %v358, %v425
    %v427 = vpop.f32.mrf.mxu0
    %v428 = vpop.f32.mrf.mxu0
    %v429 = vadd.f32 %v363, %v428
    %v430 = vpop.f32.mrf.mxu0
    %431 = vmatprep.mubr.bf16.mxu0 0
    %432 = vmatmul.mubr.bf16.gmra.mxu0 %v389
    %v433 = vpop.f32.mrf.mxu0
    %v434 = vadd.f32 %v368, %v433
    %v435 = vpop.f32.mrf.mxu0
    %v436 = vpop.f32.mrf.mxu0
    %v437 = vadd.f32 %v373, %v436
    %v438 = vpop.f32.mrf.mxu0
    %439 = vdwg.mxu0
    %v440 = vtanh.pop %v426
    %v441 = vtanh.pop %v429
    %v442 = vtanh.pop %v434
    %v443 = vtanh.pop %v437
    %v444 = vpack.c.bf16 %v441, %v440
    %v445 = vpack.c.bf16 %v443, %v442
    %v446 = vld [vmem:[%s9] sm:$0xf]
    %v447 = vld [vmem:[%s10] sm:$0xff]
    %449 = vset.pattern.permute.xlu0 0
    %450 = vperm.xlu0 %449, %v447
    %v451 = vpop.permute.xlu0 %450
    %v454 = vsel %vm186, %v446, 0
    %456 = vmatprep.subr.bf16.mxu0 0
    %457 = vmatpush1.bf16.msra.mxu0 0
    %458 = vmatprep.subr.bf16.mxu0 0
    %459 = vmatpush1.bf16.msra.mxu0 0
    %460 = vmatprep.subr.bf16.mxu0 0
    %461 = vmatpush1.bf16.msra.mxu0 0
    %462 = vmatprep.subr.bf16.mxu0 0
    %463 = vmatpush1.bf16.msra.mxu0 0
    %464 = vmatprep.subr.bf16.mxu0 0
    %465 = vmatpush1.bf16.msra.mxu0 0
    %466 = vmatprep.subr.bf16.mxu0 0
    %467 = vmatpush1.bf16.msra.mxu0 0
    %468 = vmatprep.subr.bf16.mxu0 0
    %469 = vmatpush1.bf16.msra.mxu0 %v445
    %470 = vmatprep.subr.bf16.mxu0 0
    %471 = vmatpush1.bf16.msra.mxu0 %v444
    %472 = vmatprep.subr.bf16.mxu0 0
    %473 = vmatpush2.bf16.msra.mxu0 0
    %474 = vmatprep.subr.bf16.mxu0 0
    %475 = vmatpush2.bf16.msra.mxu0 0
    %476 = vmatprep.subr.bf16.mxu0 0
    %477 = vmatpush2.bf16.msra.mxu0 0
    %478 = vmatprep.subr.bf16.mxu0 0
    %479 = vmatpush2.bf16.msra.mxu0 0
    %480 = vmatprep.subr.bf16.mxu0 0
    %481 = vmatpush2.bf16.msra.mxu0 0
    %482 = vmatprep.subr.bf16.mxu0 0
    %483 = vmatpush2.bf16.msra.mxu0 0
    %484 = vmatprep.subr.bf16.mxu0 0
    %485 = vmatpush2.bf16.msra.mxu0 0
    %486 = vmatprep.subr.bf16.mxu0 0
    %487 = vmatpush2.bf16.msra.mxu0 0
    %488 = vmatprep.mubr.bf16.mxu0 0
    %489 = vmatmul.mubr.bf16.gmra.mxu0 %v454
    %v490 = vpop.f32.mrf.mxu0
    %v491 = vadd.f32 %v451, %v490
    %v492 = vpop.f32.mrf.mxu0
    %v493 = vpop.f32.mrf.mxu0
    %v494 = vpop.f32.mrf.mxu0
    %495 = vdwg.mxu0
    %496 = vst [vmem:[#allocation2] sm:$0xff] %v491
    // Predicated region
    $region46: #{tpu_custom_call.1} parent=1 // pred_check
      _
    $region47: #{tpu_custom_call.1} parent=1 // pred_check_branch
      %498 = sbr.rel (0) target = $region49
    $region48: #{tpu_custom_call.1} parent=1 // pred_region
      %s500 = ssub.s32 128, 128
      %501 = vsyncadd [#allocation3], %s500
      %s503 = sshll.u32 [#allocation2], 4
      %s504 = int_to_ptr.vmem [resolvable:$true] %s503
      %506 = dma.vmem_to_hbm [thread:$0]  %s504, 128, %s11, [#allocation3]
    $region49: #{tpu_custom_call.1} parent=1 // pred_fallthru
      _
    // Predicated region
    $region50: #{tpu_custom_call.1} parent=1 // pred_check
      _
    $region51: #{tpu_custom_call.1} parent=1 // pred_check_branch
      %508 = sbr.rel (0) target = $region53
    $region52: #{tpu_custom_call.1} parent=1 // pred_region
      %509 = dma.done [#allocation3], 128
    $region53: #{tpu_custom_call.1} parent=1 // pred_fallthru
      _
    %510 = vsyncpa [#allocation3], 1

</llo_original>
